<compile_context>
chip_gen: v5e
topology: v5e:2x2
jax: 0.10.0
libtpu: 0.0.40
codegen_flags: <defaults>
</compile_context>

<pallas_src>
import functools

import jax
import jax.numpy as jnp
from jax import lax
from jax.experimental import pallas as pl
from jax.experimental.pallas import tpu as pltpu

_LOG_2PI = 1.8378770664093453  # log(2*pi)


def _round_up(n, m):
    return ((n + m - 1) // m) * m


def _policy_kernel(x_ref, w1_ref, b1_ref, wh_ref, bh_ref, eps_ref, out_ref,
                   *, a_pad, action_bound):
    # fc1 + relu : (TB, S) @ (S, H) -> (TB, H)   (natural MXU orientation)
    h = jnp.dot(x_ref[...], w1_ref[...], preferred_element_type=jnp.float32)
    h = jnp.maximum(h + b1_ref[...], 0.0)

    # Fused, sublane-padded mu|std heads, result transposed so batch sits on
    # the 128-lane axis: (2*A_pad, H) contracted with (TB, H) over H -> (2*A_pad, TB)
    heads = lax.dot_general(
        wh_ref[...], h,
        dimension_numbers=(((1,), (1,)), ((), ())),
        preferred_element_type=jnp.float32) + bh_ref[...]

    # A_pad is a multiple of 8, so this split is on a sublane-tile boundary.
    mu = heads[:a_pad, :]        # (A_pad, TB)
    z = heads[a_pad:, :]         # (A_pad, TB)

    # softplus, matching torch.nn.functional.softplus (beta=1, threshold=20)
    std = jnp.where(z > 20.0, z, jnp.log1p(jnp.exp(jnp.minimum(z, 20.0))))

    eps = eps_ref[...]                      # (A_pad, TB) standard-normal noise
    normal_sample = mu + std * eps          # dist.rsample()

    # Normal(mu, std).log_prob(normal_sample), simplified: (sample-mu)/std == eps
    log_prob = -0.5 * (eps * eps) - jnp.log(std) - 0.5 * _LOG_2PI

    action = jnp.tanh(normal_sample)
    # Reference quirk kept for exact forward-pass parity: tanh applied a
    # second time inside the log-det correction.
    ta = jnp.tanh(action)
    log_prob = log_prob - jnp.log(1.0 - ta * ta + 1e-7)

    # Two aligned, lane-dense, full-sublane-tile stores (no concatenate):
    # rows [0, A_pad) = scaled action, rows [A_pad, 2*A_pad) = log_prob.
    out_ref[:a_pad, :] = (action * action_bound).astype(out_ref.dtype)
    out_ref[a_pad:, :] = log_prob.astype(out_ref.dtype)


def _choose_tile(B, S, H, A_pad):
    """Pick the batch tile and scoped-VMEM limit.

    Budget includes the (double-buffered) resident weights plus the
    double-buffered streamed blocks and live activations, sized per TPU
    generation from pltpu.get_tpu_info()."""
    try:
        vmem_cap = int(pltpu.get_tpu_info().vmem_capacity_bytes)
    except Exception:
        vmem_cap = 64 * 1024 * 1024   # conservative fallback: v7x per-TC VMEM

    # Constant-index blocks are still double-buffered by the auto-pipeliner.
    weight_bytes = 2 * 4 * (S * H + H + 2 * A_pad * H + 2 * A_pad)

    # Per batch row: double-buffered streamed blocks (x, eps^T, packed out)
    # plus live f32 activations/temporaries (h, heads, ~8 elementwise temps).
    per_row = 4 * (2 * S + 2 * A_pad + 2 * 2 * A_pad
                   + H + 2 * A_pad + 8 * 2 * A_pad)

    # Keep streams + weights well inside scoped VMEM on every generation
    # (~40% of physical), leaving headroom for compiler scratch.
    stream_budget = max(2 * 1024 * 1024, int(0.40 * vmem_cap) - weight_bytes)
    cap_rows = max(128, (stream_budget // max(per_row, 1)) // 128 * 128)
    # Per-generation hard cap: big tiles on 128 MiB parts (v5e/v6e), tighter on v7x.
    hard_cap = 2048 if vmem_cap >= 96 * 1024 * 1024 else 1024
    tile_cap = min(hard_cap, cap_rows)

    if B < 256 and B <= tile_cap:
        # Single grid step; block shapes equal the full array dims (always legal).
        tile_b = B
    else:
        # Guarantee >= 2 grid steps so the "parallel" batch axis can shard
        # across v7x's 2 TensorCores.  Lane-dim blocks must be 128-aligned.
        tile_b = min(tile_cap, max(128, (B // 2) // 128 * 128))
    grid_b = pl.cdiv(B, tile_b)

    needed = weight_bytes + tile_b * per_row + (4 << 20)   # + compiler-scratch margin
    vmem_limit = int(min(0.9 * vmem_cap, max(needed, 32 << 20)))
    return tile_b, grid_b, vmem_limit


def policy_net_continuous_forward(x, params, eps, action_bound):
    """x: (B, state_dim) f32, eps: (B, action_dim) standard-normal noise.
    Returns (action, log_prob), each (B, action_dim) float32."""
    B, S = x.shape
    H = params["w1"].shape[1]
    A = params["w_mu"].shape[1]
    A_pad = _round_up(A, 8)

    # Fuse + sublane-pad the two head layers (layout plumbing, once per trace;
    # the weights are tiny).  Rows [0,A): mu head, rows [A_pad, A_pad+A): std head.
    w_heads = jnp.zeros((2 * A_pad, H), jnp.float32)
    w_heads = w_heads.at[:A, :].set(params["w_mu"].T)
    w_heads = w_heads.at[A_pad:A_pad + A, :].set(params["w_std"].T)
    b_heads = jnp.zeros((2 * A_pad, 1), jnp.float32)
    b_heads = b_heads.at[:A, :].set(params["b_mu"].T)
    b_heads = b_heads.at[A_pad:A_pad + A, :].set(params["b_std"].T)

    # eps stays an explicit input for bit-exact parity with externally drawn
    # rsample noise; this transpose+pad copies only A_pad*B*4 bytes (no pad of x).
    # TODO(synk): optionally draw eps in-kernel (pltpu.prng_seed +
    # pltpu.stateful_normal) to remove this HBM stream entirely.
    eps_t = jnp.zeros((A_pad, B), jnp.float32).at[:A, :].set(eps.T)

    tile_b, grid_b, vmem_limit = _choose_tile(B, S, H, A_pad)

    kernel = functools.partial(_policy_kernel, a_pad=A_pad,
                               action_bound=float(action_bound))

    cost = pl.CostEstimate(
        flops=int(2 * B * S * H + 2 * B * H * 2 * A_pad + 12 * B * A_pad),
        transcendentals=int(6 * B * A_pad),
        bytes_accessed=int(4 * (B * S + S * H + H + 2 * A_pad * H + 2 * A_pad
                                + A_pad * B + 2 * A_pad * B)),
    )

    out = pl.pallas_call(
        kernel,
        out_shape=jax.ShapeDtypeStruct((2 * A_pad, B), jnp.float32),
        grid=(grid_b,),
        in_specs=[
            pl.BlockSpec((tile_b, S), lambda i: (i, 0)),          # x      (batch-tiled, no pad copy)
            pl.BlockSpec((S, H), lambda i: (0, 0)),               # w1     (resident)
            pl.BlockSpec((1, H), lambda i: (0, 0)),               # b1
            pl.BlockSpec((2 * A_pad, H), lambda i: (0, 0)),       # fused padded head weight
            pl.BlockSpec((2 * A_pad, 1), lambda i: (0, 0)),       # fused padded head bias
            pl.BlockSpec((A_pad, tile_b), lambda i: (0, i)),      # eps^T  (batch-tiled)
        ],
        out_specs=pl.BlockSpec((2 * A_pad, tile_b), lambda i: (0, i)),
        compiler_params=pltpu.CompilerParams(
            dimension_semantics=("parallel",),
            vmem_limit_bytes=vmem_limit),
        cost_estimate=cost,
    )(x, params["w1"], params["b1"], w_heads, b_heads, eps_t)

    action = out[:A, :].T
    log_prob = out[A_pad:A_pad + A, :].T
    return action, log_prob


def init_params(key, state_dim, hidden_dim, action_dim):
    """PyTorch-Linear-style init: U(-1/sqrt(fan_in), 1/sqrt(fan_in)).
    Weights stored as (in_features, out_features)."""
    ks = jax.random.split(key, 6)

    def lin(kw, kb, fan_in, fan_out):
        bound = 1.0 / jnp.sqrt(jnp.float32(fan_in))
        w = jax.random.uniform(kw, (fan_in, fan_out), jnp.float32, -bound, bound)
        b = jax.random.uniform(kb, (1, fan_out), jnp.float32, -bound, bound)
        return w, b

    w1, b1 = lin(ks[0], ks[1], state_dim, hidden_dim)
    w_mu, b_mu = lin(ks[2], ks[3], hidden_dim, action_dim)
    w_std, b_std = lin(ks[4], ks[5], hidden_dim, action_dim)
    return {"w1": w1, "b1": b1, "w_mu": w_mu, "b_mu": b_mu,
            "w_std": w_std, "b_std": b_std}


def _reference_forward(x, params, eps, action_bound):
    """Plain-JAX mirror of the PyTorch forward (original formulation)."""
    h = jnp.maximum(x @ params["w1"] + params["b1"], 0.0)
    mu = h @ params["w_mu"] + params["b_mu"]
    z = h @ params["w_std"] + params["b_std"]
    std = jnp.where(z > 20.0, z, jnp.log1p(jnp.exp(jnp.minimum(z, 20.0))))
    sample = mu + std * eps
    t = (sample - mu) / std
    log_prob = -0.5 * t * t - jnp.log(std) - 0.5 * _LOG_2PI
    action = jnp.tanh(sample)
    ta = jnp.tanh(action)
    log_prob = log_prob - jnp.log(1.0 - ta * ta + 1e-7)
    return action * action_bound, log_prob


if __name__ == "__main__":
    # Small shapes consistent with the MLP policy net.
    batch, state_dim, hidden_dim, action_dim = 8, 16, 32, 4
    action_bound = 2.0

    key = jax.random.PRNGKey(0)
    k_x, k_p, k_eps = jax.random.split(key, 3)

    x = jax.random.normal(k_x, (batch, state_dim), jnp.float32)
    params = init_params(k_p, state_dim, hidden_dim, action_dim)
    eps = jax.random.normal(k_eps, (batch, action_dim), jnp.float32)  # rsample noise

    action, log_prob = policy_net_continuous_forward(x, params, eps, action_bound)
    jax.block_until_ready((action, log_prob))

    ref_a, ref_lp = _reference_forward(x, params, eps, action_bound)

    assert action.shape == (batch, action_dim)
    assert log_prob.shape == (batch, action_dim)
    assert bool(jnp.all(jnp.isfinite(action))) and bool(jnp.all(jnp.isfinite(log_prob)))
    assert bool(jnp.allclose(action, ref_a, atol=2e-3, rtol=2e-3))
    assert bool(jnp.allclose(log_prob, ref_lp, atol=2e-3, rtol=2e-3))
    print("KERNEL_OK")
</pallas_src>

<mosaic_0001>
module attributes {stable_mosaic.version = 11 : i64} {
  func.func @_policy_kernel(%arg0: i32, %arg1: memref<8x16xf32, #tpu.memory_space<vmem>>, %arg2: memref<16x32xf32, #tpu.memory_space<vmem>>, %arg3: memref<1x32xf32, #tpu.memory_space<vmem>>, %arg4: memref<16x32xf32, #tpu.memory_space<vmem>>, %arg5: memref<16x1xf32, #tpu.memory_space<vmem>>, %arg6: memref<8x8xf32, #tpu.memory_space<vmem>>, %arg7: memref<16x8xf32, #tpu.memory_space<vmem>>) attributes {dimension_semantics = [#tpu.dimension_semantics<parallel>], iteration_bounds = array<i64: 1>, scalar_prefetch = 0 : i64, scratch_operands = 0 : i64, tpu.core_type = #tpu.core_type<tc>, window_params = [{transform_indices = @transform_0, window_bounds = array<i64: 8, 16>}, {pipeline_mode = #tpu.pipeline_mode<synchronous>, transform_indices = @transform_1, window_bounds = array<i64: 16, 32>}, {pipeline_mode = #tpu.pipeline_mode<synchronous>, transform_indices = @transform_2, window_bounds = array<i64: 1, 32>}, {pipeline_mode = #tpu.pipeline_mode<synchronous>, transform_indices = @transform_3, window_bounds = array<i64: 16, 32>}, {pipeline_mode = #tpu.pipeline_mode<synchronous>, transform_indices = @transform_4, window_bounds = array<i64: 16, 1>}, {transform_indices = @transform_5, window_bounds = array<i64: 8, 8>}, {transform_indices = @transform_6, window_bounds = array<i64: 16, 8>}]} {
    %c0 = arith.constant 0 : index
    %c0_0 = arith.constant 0 : index
    %0 = vector.load %arg1[%c0, %c0_0] : memref<8x16xf32, #tpu.memory_space<vmem>>, vector<8x16xf32>
    %c0_1 = arith.constant 0 : index
    %c0_2 = arith.constant 0 : index
    %1 = vector.load %arg2[%c0_1, %c0_2] : memref<16x32xf32, #tpu.memory_space<vmem>>, vector<16x32xf32>
    %cst = arith.constant dense<0.000000e+00> : vector<8x32xf32>
    %2 = tpu.matmul %0, %1, %cst {dimension_numbers = #tpu.dot_dimension_numbers<[1], [0], [0], [1], [0, 0, 1, 1], [], []>} : vector<8x16xf32>, vector<16x32xf32>, vector<8x32xf32> -> vector<8x32xf32>
    %c0_3 = arith.constant 0 : index
    %c0_4 = arith.constant 0 : index
    %3 = vector.load %arg3[%c0_3, %c0_4] : memref<1x32xf32, #tpu.memory_space<vmem>>, vector<1x32xf32>
    %4 = vector.broadcast %3 : vector<1x32xf32> to vector<8x32xf32>
    %5 = arith.addf %2, %4 : vector<8x32xf32>
    %cst_5 = arith.constant 0.000000e+00 : f32
    %6 = vector.broadcast %cst_5 : f32 to vector<8x32xf32>
    %7 = arith.maximumf %5, %6 : vector<8x32xf32>
    %c0_6 = arith.constant 0 : index
    %c0_7 = arith.constant 0 : index
    %8 = vector.load %arg4[%c0_6, %c0_7] : memref<16x32xf32, #tpu.memory_space<vmem>>, vector<16x32xf32>
    %cst_8 = arith.constant dense<0.000000e+00> : vector<16x8xf32>
    %9 = tpu.matmul %8, %7, %cst_8 {dimension_numbers = #tpu.dot_dimension_numbers<[1], [1], [0], [0], [0, 0, 1, 0], [], []>} : vector<16x32xf32>, vector<8x32xf32>, vector<16x8xf32> -> vector<16x8xf32>
    %c0_9 = arith.constant 0 : index
    %c0_10 = arith.constant 0 : index
    %10 = vector.load %arg5[%c0_9, %c0_10] : memref<16x1xf32, #tpu.memory_space<vmem>>, vector<16x1xf32>
    %11 = vector.broadcast %10 : vector<16x1xf32> to vector<16x8xf32>
    %12 = arith.addf %9, %11 : vector<16x8xf32>
    %13 = vector.extract_strided_slice %12 {offsets = [0, 0], sizes = [8, 8], strides = [1, 1]} : vector<16x8xf32> to vector<8x8xf32>
    %14 = vector.extract_strided_slice %12 {offsets = [8, 0], sizes = [8, 8], strides = [1, 1]} : vector<16x8xf32> to vector<8x8xf32>
    %cst_11 = arith.constant 2.000000e+01 : f32
    %15 = vector.broadcast %cst_11 : f32 to vector<8x8xf32>
    %16 = arith.cmpf ogt, %14, %15 : vector<8x8xf32>
    %cst_12 = arith.constant 2.000000e+01 : f32
    %17 = vector.broadcast %cst_12 : f32 to vector<8x8xf32>
    %18 = arith.minimumf %14, %17 : vector<8x8xf32>
    %19 = math.exp %18 : vector<8x8xf32>
    %20 = math.log1p %19 : vector<8x8xf32>
    %21 = arith.select %16, %14, %20 : vector<8x8xi1>, vector<8x8xf32>
    %c0_13 = arith.constant 0 : index
    %c0_14 = arith.constant 0 : index
    %22 = vector.load %arg6[%c0_13, %c0_14] : memref<8x8xf32, #tpu.memory_space<vmem>>, vector<8x8xf32>
    %23 = arith.mulf %21, %22 : vector<8x8xf32>
    %24 = arith.addf %13, %23 : vector<8x8xf32>
    %25 = arith.mulf %22, %22 : vector<8x8xf32>
    %cst_15 = arith.constant -5.000000e-01 : f32
    %26 = vector.broadcast %cst_15 : f32 to vector<8x8xf32>
    %27 = arith.mulf %26, %25 : vector<8x8xf32>
    %28 = math.log %21 : vector<8x8xf32>
    %29 = arith.subf %27, %28 : vector<8x8xf32>
    %cst_16 = arith.constant 0.918938517 : f32
    %30 = vector.broadcast %cst_16 : f32 to vector<8x8xf32>
    %31 = arith.subf %29, %30 : vector<8x8xf32>
    %32 = math.tanh %24 : vector<8x8xf32>
    %33 = math.tanh %32 : vector<8x8xf32>
    %34 = arith.mulf %33, %33 : vector<8x8xf32>
    %cst_17 = arith.constant 1.000000e+00 : f32
    %35 = vector.broadcast %cst_17 : f32 to vector<8x8xf32>
    %36 = arith.subf %35, %34 : vector<8x8xf32>
    %cst_18 = arith.constant 1.000000e-07 : f32
    %37 = vector.broadcast %cst_18 : f32 to vector<8x8xf32>
    %38 = arith.addf %36, %37 : vector<8x8xf32>
    %39 = math.log %38 : vector<8x8xf32>
    %40 = arith.subf %31, %39 : vector<8x8xf32>
    %cst_19 = arith.constant 2.000000e+00 : f32
    %41 = vector.broadcast %cst_19 : f32 to vector<8x8xf32>
    %42 = arith.mulf %32, %41 : vector<8x8xf32>
    %c0_20 = arith.constant 0 : index
    %c0_21 = arith.constant 0 : index
    %43 = vector.load %arg7[%c0_20, %c0_21] : memref<16x8xf32, #tpu.memory_space<vmem>>, vector<8x8xf32>
    tpu.vector_store %arg7[%c0_20, %c0_21], %42 {strides = array<i32>} : memref<16x8xf32, #tpu.memory_space<vmem>>, vector<8x8xf32>,
    %c8 = arith.constant 8 : index
    %c0_22 = arith.constant 0 : index
    %44 = vector.load %arg7[%c8, %c0_22] : memref<16x8xf32, #tpu.memory_space<vmem>>, vector<8x8xf32>
    tpu.vector_store %arg7[%c8, %c0_22], %40 {strides = array<i32>} : memref<16x8xf32, #tpu.memory_space<vmem>>, vector<8x8xf32>,
    return
  }
  func.func @transform_0(%arg0: i32) -> (i32, i32) {
    %c0_i32 = arith.constant 0 : i32
    %c0_i32_0 = arith.constant 0 : i32
    return %arg0, %c0_i32 : i32, i32
  }
  func.func @transform_1(%arg0: i32) -> (i32, i32) {
    %c0_i32 = arith.constant 0 : i32
    %c0_i32_0 = arith.constant 0 : i32
    %c0_i32_1 = arith.constant 0 : i32
    return %c0_i32, %c0_i32_0 : i32, i32
  }
  func.func @transform_2(%arg0: i32) -> (i32, i32) {
    %c0_i32 = arith.constant 0 : i32
    %c0_i32_0 = arith.constant 0 : i32
    %c0_i32_1 = arith.constant 0 : i32
    return %c0_i32, %c0_i32_0 : i32, i32
  }
  func.func @transform_3(%arg0: i32) -> (i32, i32) {
    %c0_i32 = arith.constant 0 : i32
    %c0_i32_0 = arith.constant 0 : i32
    %c0_i32_1 = arith.constant 0 : i32
    return %c0_i32, %c0_i32_0 : i32, i32
  }
  func.func @transform_4(%arg0: i32) -> (i32, i32) {
    %c0_i32 = arith.constant 0 : i32
    %c0_i32_0 = arith.constant 0 : i32
    %c0_i32_1 = arith.constant 0 : i32
    return %c0_i32, %c0_i32_0 : i32, i32
  }
  func.func @transform_5(%arg0: i32) -> (i32, i32) {
    %c0_i32 = arith.constant 0 : i32
    %c0_i32_0 = arith.constant 0 : i32
    return %c0_i32, %arg0 : i32, i32
  }
  func.func @transform_6(%arg0: i32) -> (i32, i32) {
    %c0_i32 = arith.constant 0 : i32
    %c0_i32_0 = arith.constant 0 : i32
    return %c0_i32, %arg0 : i32, i32
  }
}

</mosaic_0001>

<llo_original>
// kernel: tpu_custom_call.1
$region0: #{tpu_custom_call.1}
  #allocation0 [shape = 'u32[]', space=smem, size = 0x4, offset = 0x4, fixed_abs, tag = 'smem constant byte address 0x4 - core index']
  #allocation1 [shape = 'u32[72,128]{1,0:T(1,128)}', space=vmem, size = 0x9000, scoped, tag = 'internal scratch']
  %s0 = inlined_call_operand.hbm [shape: f32[8,16], index: 0, kind: input, shape index: {}]
  %s1 = inlined_call_operand.vmem [shape: f32[16,32], index: 1, kind: input, shape index: {}]
  %s2 = inlined_call_operand.vmem [shape: f32[1,32], index: 2, kind: input, shape index: {}]
  %s3 = inlined_call_operand.hbm [shape: f32[16,32], index: 3, kind: input, shape index: {}]
  %s4 = inlined_call_operand.vmem [shape: f32[16,1], index: 4, kind: input, shape index: {}]
  %s5 = inlined_call_operand.hbm [shape: f32[8,8], index: 5, kind: input, shape index: {}]
  %s6 = inlined_call_operand.vmem [shape: f32[16,8], index: 6, kind: output, shape index: {}]
  %s7 = sld [smem:[#allocation0]]
  $region46: #{tpu_custom_call.1} parent=0
    _
  %s9 = ssub.s32 1, %s7
  %s10 = scalar_select 0, %s9, %s7
  $region1: #{tpu_custom_call.1} parent=0
    #allocation2 [shape = 'u8[4096]{0}', space=vmem, size = 0x1000, scoped, tag = 'input window, operand 0, single buffered']
    #allocation3 [shape = 's32[1]{0}', space=sflag, size = 0x4, scoped, tag = 'scoped memory for tpu_custom_call.1']
    #allocation4 [shape = 'u8[8192]{0}', space=vmem, size = 0x2000, scoped, tag = 'input window, operand 3, single buffered']
    #allocation5 [shape = 's32[1]{0}', space=sflag, size = 0x4, scoped, tag = 'scoped memory for tpu_custom_call.1']
    #allocation6 [shape = 'u8[4096]{0}', space=vmem, size = 0x1000, scoped, tag = 'input window, operand 5, single buffered']
    %11 = vsyncpa [#allocation3], 0
    %12 = vsyncpa [#allocation5], 0
    // Predicated region
    $region2: #{tpu_custom_call.1} parent=1 // pred_check
      _
    $region3: #{tpu_custom_call.1} parent=1 // pred_check_branch
      %14 = sbr.rel (0) target = $region5
    $region4: #{tpu_custom_call.1} parent=1 // pred_region
      %16 = vsyncadd [#allocation3], 0
      %s18 = sshll.u32 %s0, 4
      %s19 = int_to_ptr.hbm [resolvable:$true] %s18
      %s20 = sshll.u32 [#allocation2], 4
      %s21 = int_to_ptr.vmem [resolvable:$true] %s20
      %23 = dma.hbm_to_vmem [thread:$0]  %s19, 128, %s21, [#allocation3]
    $region5: #{tpu_custom_call.1} parent=1 // pred_fallthru
      _
    // Predicated region
    $region6: #{tpu_custom_call.1} parent=1 // pred_check
      _
    $region7: #{tpu_custom_call.1} parent=1 // pred_check_branch
      %25 = sbr.rel (0) target = $region9
    $region8: #{tpu_custom_call.1} parent=1 // pred_region
      _
    $region9: #{tpu_custom_call.1} parent=1 // pred_fallthru
      _
    // Predicated region
    $region10: #{tpu_custom_call.1} parent=1 // pred_check
      _
    $region11: #{tpu_custom_call.1} parent=1 // pred_check_branch
      %27 = sbr.rel (0) target = $region13
    $region12: #{tpu_custom_call.1} parent=1 // pred_region
      _
    $region13: #{tpu_custom_call.1} parent=1 // pred_fallthru
      _
    // Predicated region
    $region14: #{tpu_custom_call.1} parent=1 // pred_check
      _
    $region15: #{tpu_custom_call.1} parent=1 // pred_check_branch
      %29 = sbr.rel (0) target = $region17
    $region16: #{tpu_custom_call.1} parent=1 // pred_region
      %31 = vsyncadd [#allocation5], 0
      %s32 = sshll.u32 %s3, 4
      %s33 = int_to_ptr.hbm [resolvable:$true] %s32
      %s34 = sshll.u32 [#allocation4], 4
      %s35 = int_to_ptr.vmem [resolvable:$true] %s34
      %40 = dma.hbm_to_vmem [thread:$0]  %s33, 256, %s35, [#allocation5], 128, 128, 8
    $region17: #{tpu_custom_call.1} parent=1 // pred_fallthru
      _
    // Predicated region
    $region18: #{tpu_custom_call.1} parent=1 // pred_check
      _
    $region19: #{tpu_custom_call.1} parent=1 // pred_check_branch
      %42 = sbr.rel (0) target = $region21
    $region20: #{tpu_custom_call.1} parent=1 // pred_region
      _
    $region21: #{tpu_custom_call.1} parent=1 // pred_fallthru
      _
    // Predicated region
    $region22: #{tpu_custom_call.1} parent=1 // pred_check
      _
    $region23: #{tpu_custom_call.1} parent=1 // pred_check_branch
      %44 = sbr.rel (0) target = $region25
    $region24: #{tpu_custom_call.1} parent=1 // pred_region
      %46 = vsyncadd [#allocation5], 0
      %s48 = sshll.u32 %s5, 4
      %s49 = int_to_ptr.hbm [resolvable:$true] %s48
      %s50 = sshll.u32 [#allocation6], 4
      %s51 = int_to_ptr.vmem [resolvable:$true] %s50
      %53 = dma.hbm_to_vmem [thread:$0]  %s49, 128, %s51, [#allocation5]
    $region25: #{tpu_custom_call.1} parent=1 // pred_fallthru
      _
    // Predicated region
    $region26: #{tpu_custom_call.1} parent=1 // pred_check
      _
    $region27: #{tpu_custom_call.1} parent=1 // pred_check_branch
      %55 = sbr.rel (0) target = $region29
    $region28: #{tpu_custom_call.1} parent=1 // pred_region
      %57 = dma.done [#allocation3], 128
    $region29: #{tpu_custom_call.1} parent=1 // pred_fallthru
      _
    // Predicated region
    $region30: #{tpu_custom_call.1} parent=1 // pred_check
      _
    $region31: #{tpu_custom_call.1} parent=1 // pred_check_branch
      %59 = sbr.rel (0) target = $region33
    $region32: #{tpu_custom_call.1} parent=1 // pred_region
      %61 = dma.done [#allocation5], 256
    $region33: #{tpu_custom_call.1} parent=1 // pred_fallthru
      _
    // Predicated region
    $region34: #{tpu_custom_call.1} parent=1 // pred_check
      _
    $region35: #{tpu_custom_call.1} parent=1 // pred_check_branch
      %63 = sbr.rel (0) target = $region37
    $region36: #{tpu_custom_call.1} parent=1 // pred_region
      %65 = dma.done [#allocation5], 128
    $region37: #{tpu_custom_call.1} parent=1 // pred_fallthru
      _
    %v66 = vld [vmem:[#allocation2] sm:$0xff]
    %v67 = vld [vmem:[%s1] sm:$0xff]
    %v68 = vld [vmem:[%s1 + $0x8] sm:$0xff]
    %v69 = vld [vmem:[%s2] sm:$0x1]
    %v71 = vperm.slane %v69, 0
    %vm73 = vcmask 130048
    %v75 = vsel %vm73, %v66, 0
    %77 = vmatpush.msra.mxu0 0.0
    %78 = vmatpush.msra.mxu0 0.0
    %79 = vmatpush.msra.mxu0 0.0
    %80 = vmatpush.msra.mxu0 0.0
    %81 = vmatpush.msra.mxu0 0.0
    %82 = vmatpush.msra.mxu0 0.0
    %83 = vmatpush.msra.mxu0 0.0
    %84 = vmatpush.msra.mxu0 0.0
    %85 = vmatpush.msra.mxu0 0.0
    %86 = vmatpush.msra.mxu0 0.0
    %87 = vmatpush.msra.mxu0 0.0
    %88 = vmatpush.msra.mxu0 0.0
    %89 = vmatpush.msra.mxu0 0.0
    %90 = vmatpush.msra.mxu0 0.0
    %91 = vmatpush.msra.mxu0 %v68
    %92 = vmatpush.msra.mxu0 %v67
    %93 = vmatmul.f32.gmra.mxu0 %v75
    %v94 = vpop.f32.mrf.mxu0
    %v95 = vadd.f32 %v71, %v94
    %96 = vdwg.mxu0
    %v97 = vmax.f32 %v95, 0.0
    %v98 = vld [vmem:[#allocation4] sm:$0xff]
    %v99 = vld [vmem:[#allocation4 + $0x8] sm:$0xff]
    %v100 = vld [vmem:[%s4] sm:$0xff]
    %v101 = vld [vmem:[%s4 + $0x8] sm:$0xff]
    %103 = vset.pattern.permute.xlu0 0
    %104 = vperm.xlu0 %103, %v100
    %v105 = vpop.permute.xlu0 %104
    %108 = vset.pattern.permute.xlu0 0
    %109 = vperm.xlu0 %108, %v101
    %v110 = vpop.permute.xlu0 %109
    %vm112 = vcmask 261120
    %v114 = vsel %vm112, %v98, 0
    %v117 = vsel %vm112, %v99, 0
    %v120 = vsel %vm112, %v97, 0
    %122 = vmatpush.xpose.msra.mxu0 0.0
    %123 = vmatpush.xpose.msra.mxu0 0.0
    %124 = vmatpush.xpose.msra.mxu0 0.0
    %125 = vmatpush.xpose.msra.mxu0 0.0
    %126 = vmatpush.xpose.msra.mxu0 0.0
    %127 = vmatpush.xpose.msra.mxu0 0.0
    %128 = vmatpush.xpose.msra.mxu0 0.0
    %129 = vmatpush.xpose.msra.mxu0 0.0
    %130 = vmatpush.xpose.msra.mxu0 0.0
    %131 = vmatpush.xpose.msra.mxu0 0.0
    %132 = vmatpush.xpose.msra.mxu0 0.0
    %133 = vmatpush.xpose.msra.mxu0 0.0
    %134 = vmatpush.xpose.msra.mxu0 0.0
    %135 = vmatpush.xpose.msra.mxu0 0.0
    %136 = vmatpush.xpose.msra.mxu0 0.0
    %137 = vmatpush.xpose.msra.mxu0 %v120
    %138 = vmatmul.f32.gmra.mxu0 %v114
    %v139 = vpop.f32.mrf.mxu0
    %v140 = vadd.f32 %v105, %v139
    %141 = vmatmul.f32.gmra.mxu0 %v117
    %v142 = vpop.f32.mrf.mxu0
    %v143 = vadd.f32 %v110, %v142
    %144 = vdwg.mxu0
    %vm145 = vcmp.gt.f32.partialorder %v143, 20.0
    %v146 = vmin.f32 %v143, 20.0
    %v147 = vmul.f32 %v146, 1.442695
    %v148 = vpow.pop %v147
    %v149 = vadd.f32 %v148, 1.0
    %v150 = vlog2.pop %v149
    %v151 = vmul.f32 %v150, 0.6931472
    %v152 = vmul.f32 -0.5, %v148
    %v153 = vadd.f32 %v152, 1.0
    %v154 = vmul.f32 %v153, %v148
    %v155 = vand.u32 2147483647, %v148
    %vm156 = vcmp.lt.f32.partialorder %v155, 0.0004427343
    %v157 = vsel %vm156, %v154, %v151
    %v158 = vsel %vm145, %v143, %v157
    %v159 = vld [vmem:[#allocation6] sm:$0xff]
    %v160 = vmul.f32 %v158, %v159
    %v161 = vadd.f32 %v140, %v160
    %v162 = vmul.f32 %v159, %v159
    %v163 = vmul.f32 %v162, -0.5
    %v164 = vlog2.pop %v158
    %v165 = vmul.f32 %v164, 0.6931472
    %v166 = vsub.f32 %v163, %v165
    %v167 = vsub.f32 %v166, 0.9189385
    %v168 = vtanh.pop %v161
    %v169 = vtanh.pop %v168
    %v170 = vmul.f32 %v169, %v169
    %v171 = vsub.f32 1.0, %v170
    %v172 = vadd.f32 %v171, 1e-07
    %v173 = vlog2.pop %v172
    %v174 = vmul.f32 %v173, 0.6931472
    %v175 = vsub.f32 %v167, %v174
    %v176 = vmul.f32 %v168, 2.0
    %vm177 = vcmask 64512
    %178 = vst.msk [vmem:[%s6] sm:$0xff] %vm177, %v176
    %179 = vst.msk [vmem:[%s6 + $0x8] sm:$0xff] %vm177, %v175
    // Predicated region
    $region38: #{tpu_custom_call.1} parent=1 // pred_check
      _
    $region39: #{tpu_custom_call.1} parent=1 // pred_check_branch
      %181 = sbr.rel (0) target = $region41
    $region40: #{tpu_custom_call.1} parent=1 // pred_region
      _
    $region41: #{tpu_custom_call.1} parent=1 // pred_fallthru
      _
    // Predicated region
    $region42: #{tpu_custom_call.1} parent=1 // pred_check
      _
    $region43: #{tpu_custom_call.1} parent=1 // pred_check_branch
      %183 = sbr.rel (0) target = $region45
    $region44: #{tpu_custom_call.1} parent=1 // pred_region
      _
    $region45: #{tpu_custom_call.1} parent=1 // pred_fallthru
      _
    %184 = vsyncpa [#allocation3], 1
    %185 = vsyncpa [#allocation5], 1

</llo_original>
